<compile_context>
chip_gen: v7x
topology: tpu7x:2x2x1
jax: 0.10.0
libtpu: 0.0.40
codegen_flags: <defaults>
</compile_context>

<pallas_src>
import numpy as np
import jax
import jax.numpy as jnp
from jax.experimental import pallas as pl
from jax.experimental.pallas import tpu as pltpu


def _ffm_kernel(x_ref, w_ref, out_ref):
    # x_ref:   (TB, F)   int32 -- indices with field offsets already added
    # w_ref:   (V, F*D)  f32   -- tables transposed/stacked: w_ref[v, t*D+d] = W[t, v, d]
    # out_ref: (TB, P*D) f32   -- lane-dense pairwise interactions
    TB, F = x_ref.shape
    V = w_ref.shape[0]
    D = w_ref.shape[1] // F

    # Build one (F*TB, V) one-hot operand: rows [f*TB:(f+1)*TB] encode field f's indices.
    lane = jax.lax.broadcasted_iota(jnp.int32, (TB, V), 1)            # (TB, V)
    oh = jnp.concatenate(
        [(x_ref[:, f:f + 1] == lane).astype(jnp.float32) for f in range(F)],
        axis=0)                                                       # (F*TB, V)

    # Single fused MXU matmul: big[f-row-block, t-col-block] == table t gathered
    # at field f's indices == xs[t][:, f] in the PyTorch reference.
    big = jnp.dot(oh, w_ref[...], preferred_element_type=jnp.float32)  # (F*TB, F*D)

    parts = []
    for i in range(F - 1):
        for j in range(i + 1, F):
            a = big[i * TB:(i + 1) * TB, j * D:(j + 1) * D]   # xs[j][:, i]
            b = big[j * TB:(j + 1) * TB, i * D:(i + 1) * D]   # xs[i][:, j]
            parts.append(a * b)

    # One lane-dense store of the whole tile.
    out_ref[...] = jnp.concatenate(parts, axis=-1)            # (TB, P*D)


def ffm_forward(x, weights, offsets, *, tile_b=None):
    """x: (B, F) int32 raw field indices; weights: (F, V, D) f32; offsets: (F,) int32.

    Returns (B, P, D) with P = F*(F-1)//2, matching the PyTorch module's output.
    """
    B, F = x.shape
    _, V, D = weights.shape
    P = F * (F - 1) // 2

    if tile_b is None:
        tile_b = min(B, 128)
    assert B % tile_b == 0 and (tile_b % 8 == 0 or tile_b == B), (B, tile_b)

    # Glue: add field offsets (same as x + offsets.unsqueeze(0) in torch).
    x_off = (x + offsets[None, :]).astype(jnp.int32)
    # Glue: stack the F tables side-by-side along lanes -> (V, F*D).
    w2d = jnp.transpose(weights, (1, 0, 2)).reshape(V, F * D)

    grid = (pl.cdiv(B, tile_b),)
    out_flat = pl.pallas_call(
        _ffm_kernel,
        out_shape=jax.ShapeDtypeStruct((B, P * D), jnp.float32),
        grid=grid,
        in_specs=[
            pl.BlockSpec((tile_b, F), lambda b: (b, 0)),       # x tile per grid step
            pl.BlockSpec((V, F * D), lambda b: (0, 0)),        # weights resident/untiled
        ],
        out_specs=pl.BlockSpec((tile_b, P * D), lambda b: (b, 0)),
        compiler_params=pltpu.CompilerParams(
            dimension_semantics=("parallel",),
            vmem_limit_bytes=32 * 1024 * 1024,
        ),
        cost_estimate=pl.CostEstimate(
            flops=2 * B * F * V * F * D,
            transcendentals=0,
            bytes_accessed=int(x_off.size) * 4 + int(w2d.size) * 4 + B * P * D * 4,
        ),
    )(x_off, w2d)

    # Contiguous, free reshape (no transpose pass).
    return out_flat.reshape(B, P, D)


def ffm_reference(x, weights, offsets):
    """Pure-JAX reference mirroring the PyTorch module."""
    F = x.shape[1]
    x_off = x + offsets[None, :]
    xs = [weights[i][x_off] for i in range(F)]          # each (B, F, D)
    ix = []
    for i in range(F - 1):
        for j in range(i + 1, F):
            ix.append(xs[j][:, i] * xs[i][:, j])
    return jnp.stack(ix, axis=1)


if __name__ == "__main__":
    # Small, deterministic synthetic configuration.
    field_dims = np.array([3, 4, 5, 4], dtype=np.int64)   # num_fields = 4
    F = len(field_dims)
    V = int(field_dims.sum())                              # 16
    D = 32                                                 # embed_dim
    B = 32                                                 # batch
    TILE_B = 16                                            # grid of 2 batch tiles

    offsets_np = np.array((0, *np.cumsum(field_dims)[:-1]), dtype=np.int64)
    offsets = jnp.asarray(offsets_np, dtype=jnp.int32)

    key = jax.random.PRNGKey(0)
    k_w, k_x = jax.random.split(key)

    # Xavier-uniform init for each of the F embedding tables of shape (V, D).
    bound = float(np.sqrt(6.0 / (V + D)))
    weights = jax.random.uniform(
        k_w, (F, V, D), dtype=jnp.float32, minval=-bound, maxval=bound)

    # Valid per-field indices: x[:, f] in [0, field_dims[f]).
    u = jax.random.uniform(k_x, (B, F))
    x = jnp.floor(u * jnp.asarray(field_dims, dtype=jnp.float32)).astype(jnp.int32)

    out = ffm_forward(x, weights, offsets, tile_b=TILE_B)
    out = jax.block_until_ready(out)

    ref = ffm_reference(x, weights, offsets)
    assert out.shape == (B, F * (F - 1) // 2, D), out.shape
    assert np.allclose(np.asarray(out), np.asarray(ref), atol=1e-6), "mismatch vs reference"

    print("KERNEL_OK")
</pallas_src>

<mosaic_0001>
module attributes {stable_mosaic.version = 11 : i64} {
  func.func @_ffm_kernel(%arg0: i32, %arg1: memref<16x4xi32, #tpu.memory_space<vmem>>, %arg2: memref<16x128xf32, #tpu.memory_space<vmem>>, %arg3: memref<16x192xf32, #tpu.memory_space<vmem>>) attributes {dimension_semantics = [#tpu.dimension_semantics<parallel>], iteration_bounds = array<i64: 2>, scalar_prefetch = 0 : i64, scratch_operands = 0 : i64, tpu.core_type = #tpu.core_type<tc>, window_params = [{transform_indices = @transform_0, window_bounds = array<i64: 16, 4>}, {pipeline_mode = #tpu.pipeline_mode<synchronous>, transform_indices = @transform_1, window_bounds = array<i64: 16, 128>}, {transform_indices = @transform_2, window_bounds = array<i64: 16, 192>}]} {
    %0 = tpu.iota {dimensions = array<i32: 1>} : vector<16x16xi32>
    %c0 = arith.constant 0 : index
    %c0_0 = arith.constant 0 : index
    %1 = vector.load %arg1[%c0, %c0_0] : memref<16x4xi32, #tpu.memory_space<vmem>>, vector<16x1xi32>
    %2 = vector.broadcast %1 : vector<16x1xi32> to vector<16x16xi32>
    %3 = arith.cmpi eq, %2, %0 : vector<16x16xi32>
    %4 = arith.extui %3 : vector<16x16xi1> to vector<16x16xi32>
    %5 = arith.sitofp %4 : vector<16x16xi32> to vector<16x16xf32>
    %c0_1 = arith.constant 0 : index
    %c1 = arith.constant 1 : index
    %6 = vector.load %arg1[%c0_1, %c1] : memref<16x4xi32, #tpu.memory_space<vmem>>, vector<16x1xi32>
    %7 = vector.broadcast %6 : vector<16x1xi32> to vector<16x16xi32>
    %8 = arith.cmpi eq, %7, %0 : vector<16x16xi32>
    %9 = arith.extui %8 : vector<16x16xi1> to vector<16x16xi32>
    %10 = arith.sitofp %9 : vector<16x16xi32> to vector<16x16xf32>
    %c0_2 = arith.constant 0 : index
    %c2 = arith.constant 2 : index
    %11 = vector.load %arg1[%c0_2, %c2] : memref<16x4xi32, #tpu.memory_space<vmem>>, vector<16x1xi32>
    %12 = vector.broadcast %11 : vector<16x1xi32> to vector<16x16xi32>
    %13 = arith.cmpi eq, %12, %0 : vector<16x16xi32>
    %14 = arith.extui %13 : vector<16x16xi1> to vector<16x16xi32>
    %15 = arith.sitofp %14 : vector<16x16xi32> to vector<16x16xf32>
    %c0_3 = arith.constant 0 : index
    %c3 = arith.constant 3 : index
    %16 = vector.load %arg1[%c0_3, %c3] : memref<16x4xi32, #tpu.memory_space<vmem>>, vector<16x1xi32>
    %17 = vector.broadcast %16 : vector<16x1xi32> to vector<16x16xi32>
    %18 = arith.cmpi eq, %17, %0 : vector<16x16xi32>
    %19 = arith.extui %18 : vector<16x16xi1> to vector<16x16xi32>
    %20 = arith.sitofp %19 : vector<16x16xi32> to vector<16x16xf32>
    %21 = tpu.concatenate %5, %10, %15, %20 in 0 : vector<16x16xf32>, vector<16x16xf32>, vector<16x16xf32>, vector<16x16xf32> -> vector<64x16xf32>
    %c0_4 = arith.constant 0 : index
    %c0_5 = arith.constant 0 : index
    %22 = vector.load %arg2[%c0_4, %c0_5] : memref<16x128xf32, #tpu.memory_space<vmem>>, vector<16x128xf32>
    %cst = arith.constant dense<0.000000e+00> : vector<64x128xf32>
    %23 = tpu.matmul %21, %22, %cst {dimension_numbers = #tpu.dot_dimension_numbers<[1], [0], [0], [1], [0, 0, 1, 1], [], []>} : vector<64x16xf32>, vector<16x128xf32>, vector<64x128xf32> -> vector<64x128xf32>
    %24 = vector.extract_strided_slice %23 {offsets = [0, 32], sizes = [16, 32], strides = [1, 1]} : vector<64x128xf32> to vector<16x32xf32>
    %25 = vector.extract_strided_slice %23 {offsets = [16, 0], sizes = [16, 32], strides = [1, 1]} : vector<64x128xf32> to vector<16x32xf32>
    %26 = arith.mulf %24, %25 : vector<16x32xf32>
    %27 = vector.extract_strided_slice %23 {offsets = [0, 64], sizes = [16, 32], strides = [1, 1]} : vector<64x128xf32> to vector<16x32xf32>
    %28 = vector.extract_strided_slice %23 {offsets = [32, 0], sizes = [16, 32], strides = [1, 1]} : vector<64x128xf32> to vector<16x32xf32>
    %29 = arith.mulf %27, %28 : vector<16x32xf32>
    %30 = vector.extract_strided_slice %23 {offsets = [0, 96], sizes = [16, 32], strides = [1, 1]} : vector<64x128xf32> to vector<16x32xf32>
    %31 = vector.extract_strided_slice %23 {offsets = [48, 0], sizes = [16, 32], strides = [1, 1]} : vector<64x128xf32> to vector<16x32xf32>
    %32 = arith.mulf %30, %31 : vector<16x32xf32>
    %33 = vector.extract_strided_slice %23 {offsets = [16, 64], sizes = [16, 32], strides = [1, 1]} : vector<64x128xf32> to vector<16x32xf32>
    %34 = vector.extract_strided_slice %23 {offsets = [32, 32], sizes = [16, 32], strides = [1, 1]} : vector<64x128xf32> to vector<16x32xf32>
    %35 = arith.mulf %33, %34 : vector<16x32xf32>
    %36 = vector.extract_strided_slice %23 {offsets = [16, 96], sizes = [16, 32], strides = [1, 1]} : vector<64x128xf32> to vector<16x32xf32>
    %37 = vector.extract_strided_slice %23 {offsets = [48, 32], sizes = [16, 32], strides = [1, 1]} : vector<64x128xf32> to vector<16x32xf32>
    %38 = arith.mulf %36, %37 : vector<16x32xf32>
    %39 = vector.extract_strided_slice %23 {offsets = [32, 96], sizes = [16, 32], strides = [1, 1]} : vector<64x128xf32> to vector<16x32xf32>
    %40 = vector.extract_strided_slice %23 {offsets = [48, 64], sizes = [16, 32], strides = [1, 1]} : vector<64x128xf32> to vector<16x32xf32>
    %41 = arith.mulf %39, %40 : vector<16x32xf32>
    %42 = tpu.concatenate %26, %29, %32, %35, %38, %41 in 1 : vector<16x32xf32>, vector<16x32xf32>, vector<16x32xf32>, vector<16x32xf32>, vector<16x32xf32>, vector<16x32xf32> -> vector<16x192xf32>
    %c0_6 = arith.constant 0 : index
    %c0_7 = arith.constant 0 : index
    %43 = vector.load %arg3[%c0_6, %c0_7] : memref<16x192xf32, #tpu.memory_space<vmem>>, vector<16x192xf32>
    tpu.vector_store %arg3[%c0_6, %c0_7], %42 {strides = array<i32>} : memref<16x192xf32, #tpu.memory_space<vmem>>, vector<16x192xf32>,
    return
  }
  func.func @transform_0(%arg0: i32) -> (i32, i32) {
    %c0_i32 = arith.constant 0 : i32
    %c0_i32_0 = arith.constant 0 : i32
    return %arg0, %c0_i32 : i32, i32
  }
  func.func @transform_1(%arg0: i32) -> (i32, i32) {
    %c0_i32 = arith.constant 0 : i32
    %c0_i32_0 = arith.constant 0 : i32
    %c0_i32_1 = arith.constant 0 : i32
    return %c0_i32, %c0_i32_0 : i32, i32
  }
  func.func @transform_2(%arg0: i32) -> (i32, i32) {
    %c0_i32 = arith.constant 0 : i32
    %c0_i32_0 = arith.constant 0 : i32
    return %arg0, %c0_i32 : i32, i32
  }
}

</mosaic_0001>

<llo_original>
// kernel: tpu_custom_call.1
$region0: #{tpu_custom_call.1}
  #allocation0 [shape = 'u32[]', space=smem, size = 0x4, offset = 0x4, fixed_abs, tag = 'smem constant byte address 0x4 - core index']
  #allocation1 [shape = 'u32[144,128]{1,0:T(1,128)}', space=vmem, size = 0x12000, scoped, tag = 'internal scratch']
  %s0 = inlined_call_operand.vmem [shape: s32[32,4], index: 0, kind: input, shape index: {}]
  %s1 = inlined_call_operand.vmem [shape: f32[16,128], index: 1, kind: input, shape index: {}]
  %s2 = inlined_call_operand.hbm [shape: f32[32,192], index: 2, kind: output, shape index: {}]
  %s3 = sld [smem:[#allocation0]]
  $region41: #{tpu_custom_call.1} parent=0
    _
  %s5 = ssub.s32 1, %s3
  %s6 = scalar_select 0, %s5, %s3
  $region1: #{tpu_custom_call.1} parent=0
    #allocation2 [shape = 'u8[32768]{0}', space=vmem, size = 0x8000, scoped, tag = 'output window, operand 0']
    #allocation3 [shape = 's32[2]{0}', space=sflag, size = 0x8, scoped, tag = 'scoped memory for tpu_custom_call.1']
    %7 = vsyncpa [#allocation3], 0
    %s8 = scalar_lea.sflag [#allocation3], 1
    %9 = vsyncpa %s8, 0
    loop: start=0, step=1, limit=4
    $region2: #{tpu_custom_call.1} parent=1 // loop_pre_header
      _
    $region3: #{tpu_custom_call.1} parent=1 // loop_header
      %s11 = sphi 0, %s15
      %p12 = scmp.ge.s32.totalorder %s11, 4
      %s21 = sphi 0, %s23
      %s24 = sphi 0, %s21
      %s25 = sphi 0, %s24
      %s41 = sphi 0, %s25
      %s45 = sphi 0, %s45
      %s47 = sphi 0, %s45
      %s48 = sphi 0, %s47
      %s62 = sphi 0, %s48
      %s68 = sphi 0, %s70
      %s71 = sphi 0, %s68
      %s72 = sphi 0, %s71
      %s88 = sphi 0, %s72
    $region4: #{tpu_custom_call.1} parent=1 // loop_header_branch
      %14 = sbr.rel (%p12) target = $region8
    $region5: #{tpu_custom_call.1} parent=1 // loop_body
      %s16 = ssub.s32 %s11, 1
      %s17 = ssub.s32 %s11, 2
      %s18 = sadd.s32 %s11, 1
      %s19 = ssub.s32 %s11, %s18
      %p20 = scmp.eq.s32.totalorder %s19, 0
      %s22 = sadd.s32 %s21, 1
      %s23 = scalar_select %p20, %s21, %s22
      %p26 = pneg %p20
      %p27 = scmp.eq.s32.totalorder %s11, 1
      %p28 = por %p26, %p27
      %p29 = scmp.ne.s32.totalorder %s21, %s24
      %p30 = scmp.eq.s32.totalorder %s11, 0
      %p31 = por %p29, %p30
      %p32 = scmp.ne.s32.totalorder %s21, %s24
      %p33 = scmp.eq.s32.totalorder %s16, 1
      %p34 = por %p32, %p33
      %p35 = scmp.ne.s32.totalorder %s24, %s25
      %p36 = scmp.eq.s32.totalorder %s16, 0
      %p37 = por %p35, %p36
      %p38 = scmp.ne.s32.totalorder %s24, %s25
      %p39 = scmp.eq.s32.totalorder %s17, 1
      %p40 = por %p38, %p39
      %p42 = scmp.ne.s32.totalorder %s25, %s41
      %p43 = scmp.eq.s32.totalorder %s17, 0
      %p44 = por %p42, %p43
      %s46 = sadd.s32 %s45, 1
      %p49 = scmp.eq.s32.totalorder %s11, 1
      %p50 = scmp.ne.s32.totalorder %s45, %s47
      %p51 = scmp.eq.s32.totalorder %s11, 0
      %p52 = por %p50, %p51
      %p53 = scmp.ne.s32.totalorder %s45, %s47
      %p54 = scmp.eq.s32.totalorder %s16, 1
      %p55 = por %p53, %p54
      %p56 = scmp.ne.s32.totalorder %s47, %s48
      %p57 = scmp.eq.s32.totalorder %s16, 0
      %p58 = por %p56, %p57
      %p59 = scmp.ne.s32.totalorder %s47, %s48
      %p60 = scmp.eq.s32.totalorder %s17, 1
      %p61 = por %p59, %p60
      %p63 = scmp.ne.s32.totalorder %s48, %s62
      %p64 = scmp.eq.s32.totalorder %s17, 0
      %p65 = por %p63, %p64
      %s66 = ssub.s32 %s11, %s18
      %p67 = scmp.eq.s32.totalorder %s66, 0
      %s69 = sadd.s32 %s68, 1
      %s70 = scalar_select %p67, %s68, %s69
      %p73 = pneg %p67
      %p74 = scmp.eq.s32.totalorder %s11, 1
      %p75 = por %p73, %p74
      %p76 = scmp.ne.s32.totalorder %s68, %s71
      %p77 = scmp.eq.s32.totalorder %s11, 0
      %p78 = por %p76, %p77
      %p79 = scmp.ne.s32.totalorder %s68, %s71
      %p80 = scmp.eq.s32.totalorder %s16, 1
      %p81 = por %p79, %p80
      %p82 = scmp.ne.s32.totalorder %s71, %s72
      %p83 = scmp.eq.s32.totalorder %s16, 0
      %p84 = por %p82, %p83
      %p85 = scmp.ne.s32.totalorder %s71, %s72
      %p86 = scmp.eq.s32.totalorder %s17, 1
      %p87 = por %p85, %p86
      %p89 = scmp.ne.s32.totalorder %s72, %s88
      %p90 = scmp.eq.s32.totalorder %s17, 0
      %p91 = por %p89, %p90
      %p92 = scmp.le.s32.totalorder 1, %s11
      %p93 = scmp.lt.s32.totalorder %s11, 3
      %p94 = pnand %p92, %p93
      %p95 = pneg %p94
      // Predicated region
      $region9: #{tpu_custom_call.1} parent=5 // pred_check
        _
      $region10: #{tpu_custom_call.1} parent=5 // pred_check_branch
        %97 = sbr.rel (%p94) target = $region12
      $region11: #{tpu_custom_call.1} parent=5 // pred_region
        %s98 = ssub.s32 %s11, 1
        // Predicated region
        $region13: #{tpu_custom_call.1} parent=11 // pred_check
          %p99 = pneg %p58
        $region14: #{tpu_custom_call.1} parent=11 // pred_check_branch
          %101 = sbr.rel (%p99) target = $region16
        $region15: #{tpu_custom_call.1} parent=11 // pred_region
          _
        $region16: #{tpu_custom_call.1} parent=11 // pred_fallthru
          _
      $region12: #{tpu_custom_call.1} parent=5 // pred_fallthru
        _
      %p102 = scmp.lt.s32.totalorder %s11, 2
      // Predicated region
      $region17: #{tpu_custom_call.1} parent=5 // pred_check
        %p103 = pneg %p102
      $region18: #{tpu_custom_call.1} parent=5 // pred_check_branch
        %105 = sbr.rel (%p103) target = $region20
      $region19: #{tpu_custom_call.1} parent=5 // pred_region
        // Predicated region
        $region21: #{tpu_custom_call.1} parent=19 // pred_check
          %p106 = pneg %p31
        $region22: #{tpu_custom_call.1} parent=19 // pred_check_branch
          %108 = sbr.rel (%p106) target = $region24
        $region23: #{tpu_custom_call.1} parent=19 // pred_region
          %s109 = smul.u32 2, %s11
          %p110 = scmp.lt.s32.totalorder %s109, 3
          %s111 = scalar_select %p110, %s109, 3
          %s112 = smul.addr %s111, 8
          %s113 = scalar_lea.vmem %s0, %s112
          %s114 = smul.u32 2, %s11
        $region24: #{tpu_custom_call.1} parent=19 // pred_fallthru
          _
      $region20: #{tpu_custom_call.1} parent=5 // pred_fallthru
        _
      %p115 = scmp.le.s32.totalorder 1, %s11
      %p116 = scmp.lt.s32.totalorder %s11, 3
      %p117 = pnand %p115, %p116
      %p118 = pneg %p117
      // Predicated region
      $region25: #{tpu_custom_call.1} parent=5 // pred_check
        _
      $region26: #{tpu_custom_call.1} parent=5 // pred_check_branch
        %120 = sbr.rel (%p117) target = $region28
      $region27: #{tpu_custom_call.1} parent=5 // pred_region
        %s121 = ssub.s32 %s11, 1
        %s122 = smul.u32 2, %s16
        %p123 = scmp.lt.s32.totalorder %s122, 3
        %s124 = scalar_select %p123, %s122, 3
        %s125 = smul.addr %s124, 8
        %s126 = scalar_lea.vmem %s0, %s125
        %p127 = pneg %p37
        %p128 = pneg %p34
        %p129 = pneg %p58
        %p130 = pneg %p55
        %p131 = pneg %p84
        %p132 = pneg %p81
        %s133 = sand.u32 %s71, 1
        %s134 = scalar_lea.sflag [#allocation3], %s133
        %s135 = sand.u32 %s71, 1
        %s136 = smul.addr %s135, 32
        %s137 = scalar_lea.vmem [#allocation2], %s136
        %s138 = smul.u32 2, %s16
        %p139 = scmp.lt.s32.totalorder %s138, 3
        %s140 = scalar_select %p139, %s138, 3
        %s141 = smul.addr %s140, 8
        %s142 = scalar_lea.vmem %s0, %s141
        %s143 = smul.u32 2, %s16
        %s144 = smul.u32 2, %s16
        %v145 = vlaneseq
        %v146 = vand.u32 %v145, 127
        %v147 = vld [vmem:[%s142] sm:$0xff]
        %v148 = vld [vmem:[%s142 + $0x8] sm:$0xff]
        %149 = vset.pattern.permute.xlu0 0
        %150 = vperm.xlu0 %149, %v147
        %v151 = vpop.permute.xlu0 %150
        %152 = vset.pattern.permute.xlu0 0
        %153 = vperm.xlu0 %152, %v148
        %v154 = vpop.permute.xlu0 %153
        %vm155 = vcmp.eq.s32.totalorder %v151, %v146
        %vm156 = vcmp.eq.s32.totalorder %v154, %v146
        %v157 = vsel %vm155, 1, 0
        %v158 = vsel %vm156, 1, 0
        %v159 = vcvt.s32.f32 %v157
        %v160 = vcvt.s32.f32 %v158
        %161 = vset.pattern.permute.xlu0 1
        %162 = vperm.xlu0 %161, %v147
        %v163 = vpop.permute.xlu0 %162
        %164 = vset.pattern.permute.xlu0 1
        %165 = vperm.xlu0 %164, %v148
        %v166 = vpop.permute.xlu0 %165
        %vm167 = vcmp.eq.s32.totalorder %v163, %v146
        %vm168 = vcmp.eq.s32.totalorder %v166, %v146
        %v169 = vsel %vm167, 1, 0
        %v170 = vsel %vm168, 1, 0
        %v171 = vcvt.s32.f32 %v169
        %v172 = vcvt.s32.f32 %v170
        %173 = vset.pattern.permute.xlu0 2
        %174 = vperm.xlu0 %173, %v147
        %v175 = vpop.permute.xlu0 %174
        %176 = vset.pattern.permute.xlu0 2
        %177 = vperm.xlu0 %176, %v148
        %v178 = vpop.permute.xlu0 %177
        %vm179 = vcmp.eq.s32.totalorder %v175, %v146
        %vm180 = vcmp.eq.s32.totalorder %v178, %v146
        %v181 = vsel %vm179, 1, 0
        %v182 = vsel %vm180, 1, 0
        %v183 = vcvt.s32.f32 %v181
        %v184 = vcvt.s32.f32 %v182
        %185 = vset.pattern.permute.xlu0 3
        %186 = vperm.xlu0 %185, %v147
        %v187 = vpop.permute.xlu0 %186
        %188 = vset.pattern.permute.xlu0 3
        %189 = vperm.xlu0 %188, %v148
        %v190 = vpop.permute.xlu0 %189
        %vm191 = vcmp.eq.s32.totalorder %v187, %v146
        %vm192 = vcmp.eq.s32.totalorder %v190, %v146
        %v193 = vsel %vm191, 1, 0
        %v194 = vsel %vm192, 1, 0
        %v195 = vcvt.s32.f32 %v193
        %v196 = vcvt.s32.f32 %v194
        %v197 = vld [vmem:[%s1] sm:$0xff]
        %v198 = vld [vmem:[%s1 + $0x8] sm:$0xff]
        %vm199 = vcmask 130048
        %v201 = vsel %vm199, %v159, 0
        %v204 = vsel %vm199, %v160, 0
        %v207 = vsel %vm199, %v171, 0
        %v210 = vsel %vm199, %v172, 0
        %v213 = vsel %vm199, %v183, 0
        %v216 = vsel %vm199, %v184, 0
        %v219 = vsel %vm199, %v195, 0
        %v222 = vsel %vm199, %v196, 0
        %224 = vmatprep.subr.mxu0 0.0
        %225 = vmatpush1.msra.mxu0 %v197
        %226 = vmatprep.subr.mxu0 0.0
        %227 = vmatpush1.msra.mxu0 %v198
        %228 = vmatprep.subr.mxu0 0.0
        %229 = vmatpush1.msra.mxu0 0.0
        %230 = vmatprep.subr.mxu0 0.0
        %231 = vmatpush1.msra.mxu0 0.0
        %232 = vmatprep.subr.mxu0 0.0
        %233 = vmatpush1.msra.mxu0 0.0
        %234 = vmatprep.subr.mxu0 0.0
        %235 = vmatpush1.msra.mxu0 0.0
        %236 = vmatprep.subr.mxu0 0.0
        %237 = vmatpush1.msra.mxu0 0.0
        %238 = vmatprep.subr.mxu0 0.0
        %239 = vmatpush1.msra.mxu0 0.0
        %240 = vmatprep.subr.mxu0 0.0
        %241 = vmatpush1.msra.mxu0 0.0
        %242 = vmatprep.subr.mxu0 0.0
        %243 = vmatpush1.msra.mxu0 0.0
        %244 = vmatprep.subr.mxu0 0.0
        %245 = vmatpush1.msra.mxu0 0.0
        %246 = vmatprep.subr.mxu0 0.0
        %247 = vmatpush1.msra.mxu0 0.0
        %248 = vmatprep.subr.mxu0 0.0
        %249 = vmatpush1.msra.mxu0 0.0
        %250 = vmatprep.subr.mxu0 0.0
        %251 = vmatpush1.msra.mxu0 0.0
        %252 = vmatprep.subr.mxu0 0.0
        %253 = vmatpush1.msra.mxu0 0.0
        %254 = vmatprep.subr.mxu0 0.0
        %255 = vmatpush1.msra.mxu0 0.0
        %256 = vmatprep.subr.mxu0 0.0
        %257 = vmatpush1.msra.mxu0 0.0
        %258 = vmatprep.subr.mxu0 0.0
        %259 = vmatpush1.msra.mxu0 0.0
        %260 = vmatprep.subr.mxu0 0.0
        %261 = vmatpush1.msra.mxu0 0.0
        %262 = vmatprep.subr.mxu0 0.0
        %263 = vmatpush1.msra.mxu0 0.0
        %264 = vmatprep.subr.mxu0 0.0
        %265 = vmatpush1.msra.mxu0 0.0
        %266 = vmatprep.subr.mxu0 0.0
        %267 = vmatpush1.msra.mxu0 0.0
        %268 = vmatprep.subr.mxu0 0.0
        %269 = vmatpush1.msra.mxu0 0.0
        %270 = vmatprep.subr.mxu0 0.0
        %271 = vmatpush1.msra.mxu0 0.0
        %272 = vmatprep.subr.mxu0 0.0
        %273 = vmatpush1.msra.mxu0 0.0
        %274 = vmatprep.subr.mxu0 0.0
        %275 = vmatpush1.msra.mxu0 0.0
        %276 = vmatprep.subr.mxu0 0.0
        %277 = vmatpush1.msra.mxu0 0.0
        %278 = vmatprep.subr.mxu0 0.0
        %279 = vmatpush1.msra.mxu0 0.0
        %280 = vmatprep.subr.mxu0 0.0
        %281 = vmatpush1.msra.mxu0 0.0
        %282 = vmatprep.subr.mxu0 0.0
        %283 = vmatpush1.msra.mxu0 0.0
        %284 = vmatprep.subr.mxu0 0.0
        %285 = vmatpush1.msra.mxu0 0.0
        %286 = vmatprep.subr.mxu0 0.0
        %287 = vmatpush1.msra.mxu0 0.0
        %288 = vmatprep.mubr.f32.mxu0 0.0
        %289 = vmatmul.mubr.f32.gmra.mrb[0].mxu0 %v201
        %v290 = vpop.f32.mrb[0].mxu0
        %v291 = vadd.f32 0.0, %v290
        %v292 = vpop.f32.mrb[0].mxu0
        %293 = vmatprep.mubr.f32.mxu0 0.0
        %294 = vmatmul.mubr.f32.gmra.mrb[0].mxu0 %v204
        %v295 = vpop.f32.mrb[0].mxu0
        %v296 = vadd.f32 0.0, %v295
        %v297 = vpop.f32.mrb[0].mxu0
        %298 = vmatprep.mubr.f32.mxu0 0.0
        %299 = vmatmul.mubr.f32.gmra.mrb[0].mxu0 %v207
        %v300 = vpop.f32.mrb[0].mxu0
        %v301 = vadd.f32 0.0, %v300
        %v302 = vpop.f32.mrb[0].mxu0
        %303 = vmatprep.mubr.f32.mxu0 0.0
        %304 = vmatmul.mubr.f32.gmra.mrb[0].mxu0 %v210
        %v305 = vpop.f32.mrb[0].mxu0
        %v306 = vadd.f32 0.0, %v305
        %v307 = vpop.f32.mrb[0].mxu0
        %308 = vmatprep.mubr.f32.mxu0 0.0
        %309 = vmatmul.mubr.f32.gmra.mrb[0].mxu0 %v213
        %v310 = vpop.f32.mrb[0].mxu0
        %v311 = vadd.f32 0.0, %v310
        %v312 = vpop.f32.mrb[0].mxu0
        %313 = vmatprep.mubr.f32.mxu0 0.0
        %314 = vmatmul.mubr.f32.gmra.mrb[0].mxu0 %v216
        %v315 = vpop.f32.mrb[0].mxu0
        %v316 = vadd.f32 0.0, %v315
        %v317 = vpop.f32.mrb[0].mxu0
        %318 = vmatprep.mubr.f32.mxu0 0.0
        %319 = vmatmul.mubr.f32.gmra.mrb[0].mxu0 %v219
        %v320 = vpop.f32.mrb[0].mxu0
        %v321 = vadd.f32 0.0, %v320
        %v322 = vpop.f32.mrb[0].mxu0
        %323 = vmatprep.mubr.f32.mxu0 0.0
        %324 = vmatmul.mubr.f32.gmra.mrb[0].mxu0 %v222
        %v325 = vpop.f32.mrb[0].mxu0
        %v326 = vadd.f32 0.0, %v325
        %v327 = vpop.f32.mrb[0].mxu0
        %328 = vdwg.mxu0
        %331 = vrot.lane.b32.xlu0 %v301, 32
        %v332 = vpop.permute.xlu0 %331
        %333 = vrot.lane.b32.xlu0 %v306, 32
        %v334 = vpop.permute.xlu0 %333
        %v337 = vmul.f32 %v291, %v332
        %v338 = vmul.f32 %v296, %v334
        %341 = vrot.lane.b32.xlu0 %v311, 64
        %v342 = vpop.permute.xlu0 %341
        %343 = vrot.lane.b32.xlu0 %v316, 64
        %v344 = vpop.permute.xlu0 %343
        %v347 = vmul.f32 %v291, %v342
        %v348 = vmul.f32 %v296, %v344
        %351 = vrot.lane.b32.xlu0 %v321, 96
        %v352 = vpop.permute.xlu0 %351
        %353 = vrot.lane.b32.xlu0 %v326, 96
        %v354 = vpop.permute.xlu0 %353
        %v357 = vmul.f32 %v291, %v352
        %v358 = vmul.f32 %v296, %v354
        %359 = vrot.lane.b32.xlu0 %v311, 32
        %v360 = vpop.permute.xlu0 %359
        %361 = vrot.lane.b32.xlu0 %v316, 32
        %v362 = vpop.permute.xlu0 %361
        %v365 = vmul.f32 %v301, %v360
        %v366 = vmul.f32 %v306, %v362
        %367 = vrot.lane.b32.xlu0 %v321, 64
        %v368 = vpop.permute.xlu0 %367
        %369 = vrot.lane.b32.xlu0 %v326, 64
        %v370 = vpop.permute.xlu0 %369
        %v373 = vmul.f32 %v301, %v368
        %v374 = vmul.f32 %v306, %v370
        %375 = vrot.lane.b32.xlu0 %v321, 32
        %v376 = vpop.permute.xlu0 %375
        %377 = vrot.lane.b32.xlu0 %v326, 32
        %v378 = vpop.permute.xlu0 %377
        %v381 = vmul.f32 %v311, %v376
        %v382 = vmul.f32 %v316, %v378
        %385 = vrot.lane.b32.xlu0 %v337, 96
        %v386 = vpop.permute.xlu0 %385
        %387 = vrot.lane.b32.xlu0 %v338, 96
        %v388 = vpop.permute.xlu0 %387
        %393 = vrot.lane.b32.xlu0 %v347, 96
        %v394 = vpop.permute.xlu0 %393
        %395 = vrot.lane.b32.xlu0 %v348, 96
        %v396 = vpop.permute.xlu0 %395
        %401 = vrot.lane.b32.xlu0 %v357, 96
        %v402 = vpop.permute.xlu0 %401
        %403 = vrot.lane.b32.xlu0 %v358, 96
        %v404 = vpop.permute.xlu0 %403
        %409 = vrot.lane.b32.xlu0 %v365, 32
        %v410 = vpop.permute.xlu0 %409
        %411 = vrot.lane.b32.xlu0 %v366, 32
        %v412 = vpop.permute.xlu0 %411
        %417 = vrot.lane.b32.xlu0 %v373, 32
        %v418 = vpop.permute.xlu0 %417
        %419 = vrot.lane.b32.xlu0 %v374, 32
        %v420 = vpop.permute.xlu0 %419
        %425 = vrot.lane.b32.xlu0 %v381, 64
        %v426 = vpop.permute.xlu0 %425
        %427 = vrot.lane.b32.xlu0 %v382, 64
        %v428 = vpop.permute.xlu0 %427
        %vm431 = vcmask 261120
        %v432 = vsel %vm431, %v386, %v394
        %v433 = vsel %vm431, %v388, %v396
        %vm434 = vcmask 523264
        %v435 = vsel %vm434, %v432, %v402
        %v436 = vsel %vm434, %v433, %v404
        %vm437 = vcmask 785408
        %v438 = vsel %vm437, %v435, %v410
        %v439 = vsel %vm437, %v436, %v412
        %v440 = vsel %vm431, %v418, %v426
        %v441 = vsel %vm431, %v420, %v428
        %442 = vst [vmem:[%s137] sm:$0xff] %v438
        %443 = vst.msk [vmem:[%s137 + $0x8] sm:$0xff] %vm434, %v440
        %444 = vst [vmem:[%s137 + $0x10] sm:$0xff] %v439
        %445 = vst.msk [vmem:[%s137 + $0x18] sm:$0xff] %vm434, %v441
        %s446 = sand.u32 %s71, 1
        %s447 = scalar_lea.sflag [#allocation3], %s446
        %s448 = sand.u32 %s71, 1
        %s449 = smul.addr %s448, 32
        %s450 = scalar_lea.vmem [#allocation2], %s449
        // Predicated region
        $region29: #{tpu_custom_call.1} parent=27 // pred_check
          %p451 = pneg %p81
        $region30: #{tpu_custom_call.1} parent=27 // pred_check_branch
          %453 = sbr.rel (%p451) target = $region32
        $region31: #{tpu_custom_call.1} parent=27 // pred_region
          %s454 = smul.u32 2, %s16
          %s456 = ssub.s32 512, 512
          %457 = vsyncadd %s447, %s456
          %s458 = smul.addr %s454, 2
          %s459 = smul.addr %s458, 128
          %s460 = scalar_lea.hbm %s2, %s459
          %s461 = sshll.u32 %s450, 4
          %s462 = int_to_ptr.vmem [resolvable:$true] %s461
          %467 = dma.vmem_to_hbm [thread:$0]  %s462, 512, %s460, %s447, 256, 256, 16
        $region32: #{tpu_custom_call.1} parent=27 // pred_fallthru
          _
      $region28: #{tpu_custom_call.1} parent=5 // pred_fallthru
        _
      %p468 = scmp.le.s32.totalorder 2, %s11
      // Predicated region
      $region33: #{tpu_custom_call.1} parent=5 // pred_check
        %p469 = pneg %p468
      $region34: #{tpu_custom_call.1} parent=5 // pred_check_branch
        %471 = sbr.rel (%p469) target = $region36
      $region35: #{tpu_custom_call.1} parent=5 // pred_region
        %s472 = ssub.s32 %s11, 2
        // Predicated region
        $region37: #{tpu_custom_call.1} parent=35 // pred_check
          %p473 = pneg %p87
        $region38: #{tpu_custom_call.1} parent=35 // pred_check_branch
          %475 = sbr.rel (%p473) target = $region40
        $region39: #{tpu_custom_call.1} parent=35 // pred_region
          %s476 = sand.u32 %s72, 1
          %s477 = scalar_lea.sflag [#allocation3], %s476
          %s478 = sand.u32 %s72, 1
          %s479 = smul.addr %s478, 32
          %s480 = scalar_lea.vmem [#allocation2], %s479
          %481 = dma.done %s477, 512
        $region40: #{tpu_custom_call.1} parent=35 // pred_fallthru
          _
      $region36: #{tpu_custom_call.1} parent=5 // pred_fallthru
        _
    $region6: #{tpu_custom_call.1} parent=1 // loop_footer
      %s15 = sadd.s32 1, %s11
    $region7: #{tpu_custom_call.1} parent=1 // loop_footer_branch
      %10 = sbr.rel target = $region3
    $region8: #{tpu_custom_call.1} parent=1 // loop_exit
      _
    %482 = vsyncpa [#allocation3], 1
    %s483 = scalar_lea.sflag [#allocation3], 1
    %484 = vsyncpa %s483, 1

</llo_original>
